<compile_context>
chip_gen: v7x
topology: tpu7x:2x2x1
jax: 0.10.0
libtpu: 0.0.40
codegen_flags: <defaults>
</compile_context>

<pallas_src>
import functools
import math

import jax
import jax.numpy as jnp
from jax.experimental import pallas as pl
from jax.experimental.pallas import tpu as pltpu


def _rbf_kernel(x_ref, e_ref, off_ref, o_ref, *, inv_h):
    # x_ref:   (TM, DC)      input rows (any float dtype)
    # e_ref:   (DC, DC*G)    bf16 one-hot replication matrix E[k, l] = (l//G == k)
    # off_ref: (1, DC*G)     f32 per-lane offset: grid_min*inv_h + (l % G)
    # o_ref:   (TM, DC*G)    basis, already in the final d-major/g-minor layout
    x = x_ref[...].astype(jnp.float32) * inv_h           # (TM, DC)

    # Exact 3-way bf16 split of x (hi/mid/lo sum back to x to ~2^-24 rel).
    p1 = x.astype(jnp.bfloat16)
    r1 = x - p1.astype(jnp.float32)
    p2 = r1.astype(jnp.bfloat16)
    r2 = r1 - p2.astype(jnp.float32)
    p3 = r2.astype(jnp.bfloat16)

    e = e_ref[...]                                        # (DC, DC*G) bf16
    xb = jnp.dot(p1, e, preferred_element_type=jnp.float32)
    xb = xb + jnp.dot(p2, e, preferred_element_type=jnp.float32)
    xb = xb + jnp.dot(p3, e, preferred_element_type=jnp.float32)   # (TM, DC*G)

    z = xb - off_ref[...]                                 # broadcast (1, DC*G)
    o_ref[...] = jnp.exp(-(z * z)).astype(o_ref.dtype)


def _round_up(a, b):
    return (a + b - 1) // b * b


def _choose_dc(d, g):
    # Feature-dim chunk.  A chunk must be a multiple of 128 (BlockSpec last-dim
    # rule) unless it covers all of D.  Bounded so the one-hot matrix (DC, DC*G)
    # and the per-step blocks stay small in VMEM.
    if d <= 256 or d % 128 != 0:
        # TODO(synk): very large D that is not a multiple of 128 falls back to a
        # single chunk; chunk + mask if such shapes ever show up.
        return d
    return 256 if d % 256 == 0 else 128


def basis_transform(x, grid_min=-2.0, grid_max=2.0, num_grids=8):
    """RBF basis expansion. x: [..., D] -> [..., D, num_grids]."""
    if num_grids < 2:
        raise ValueError("num_grids must be >= 2 (h would be undefined).")
    orig_shape = x.shape
    D = orig_shape[-1]
    N = math.prod(orig_shape[:-1])  # prod(()) == 1 for 1-D inputs
    G = num_grids
    x2 = x.reshape(N, D)

    h = (grid_max - grid_min) / (G - 1)
    inv_h = 1.0 / h
    out_dtype = jnp.promote_types(x.dtype, jnp.float32)
    itemsize = jnp.dtype(out_dtype).itemsize

    dc = _choose_dc(D, G)
    dg = dc * G
    n_dchunks = D // dc

    # Row tile: aim for a ~3 MiB output block (per-step overhead amortization)
    # but never exceed the (padded) row count; keep it a multiple of 8.
    target_out_bytes = 3 * 1024 * 1024
    tm = max(8, min(2048, target_out_bytes // max(1, dg * itemsize)))
    tm = (tm // 8) * 8
    tm = min(tm, _round_up(N, 8))
    npad = _round_up(N, tm)
    if npad != N:
        x2 = jnp.pad(x2, ((0, npad - N), (0, 0)))

    # Constant replication matrix and per-lane offset (computed once, tiny).
    lane = jnp.arange(dg, dtype=jnp.int32)
    feat = jnp.arange(dc, dtype=jnp.int32)
    e_mat = (lane[None, :] // G == feat[:, None]).astype(jnp.bfloat16)   # (DC, DG)
    off_row = (float(grid_min) * inv_h
               + (lane % G).astype(jnp.float32)).reshape(1, dg)           # (1, DG)

    kernel = functools.partial(_rbf_kernel, inv_h=float(inv_h))

    out_flat = pl.pallas_call(
        kernel,
        out_shape=jax.ShapeDtypeStruct((npad, D * G), out_dtype),
        grid_spec=pltpu.PrefetchScalarGridSpec(
            num_scalar_prefetch=0,
            grid=(npad // tm, n_dchunks),
            in_specs=[
                pl.BlockSpec((tm, dc), lambda i, j: (i, j)),
                pl.BlockSpec((dc, dg), lambda i, j: (0, 0)),   # fetched once
                pl.BlockSpec((1, dg), lambda i, j: (0, 0)),    # fetched once
            ],
            out_specs=pl.BlockSpec((tm, dg), lambda i, j: (i, j)),
        ),
        compiler_params=pltpu.CompilerParams(
            dimension_semantics=("parallel", "parallel"),
            vmem_limit_bytes=48 * 1024 * 1024,
        ),
    )(x2, e_mat, off_row)

    out = out_flat[:N] if npad != N else out_flat
    # (N, D*G) -> (..., D, G): pure trailing-dim split, no transpose pass.
    return out.reshape(*orig_shape, num_grids)


def _reference(x, grid_min=-2.0, grid_max=2.0, num_grids=8):
    grid = jnp.linspace(grid_min, grid_max, num_grids, dtype=jnp.float32)
    h = (grid_max - grid_min) / (num_grids - 1)
    xe = x[..., None].astype(jnp.float32)
    return jnp.exp(-(((xe - grid) / h) ** 2))


if __name__ == "__main__":
    key = jax.random.PRNGKey(0)

    # (batch, seq, hidden) — lane-dense hidden dim.
    x = jax.random.normal(key, (2, 8, 128), dtype=jnp.float32)
    out = jax.block_until_ready(basis_transform(x))
    assert out.shape == (2, 8, 128, 8), out.shape
    assert jnp.allclose(out, _reference(x), rtol=1e-5, atol=1e-5)

    # Odd shape: exercises row padding and a non-128 last dim.
    x2 = jax.random.normal(jax.random.PRNGKey(1), (3, 5, 64), dtype=jnp.float32)
    out2 = jax.block_until_ready(basis_transform(x2))
    assert out2.shape == (3, 5, 64, 8), out2.shape
    assert jnp.allclose(out2, _reference(x2), rtol=1e-5, atol=1e-5)

    # Small hidden dim + 2-D input: exercises the D*G < 512 lane path.
    x3 = jax.random.normal(jax.random.PRNGKey(2), (4, 32), dtype=jnp.float32)
    out3 = jax.block_until_ready(basis_transform(x3))
    assert out3.shape == (4, 32, 8), out3.shape
    assert jnp.allclose(out3, _reference(x3), rtol=1e-5, atol=1e-5)

    print("KERNEL_OK")
</pallas_src>

<mosaic_0001>
module attributes {stable_mosaic.version = 11 : i64} {
  func.func @_rbf_kernel(%arg0: i32, %arg1: i32, %arg2: memref<16x128xf32, #tpu.memory_space<vmem>>, %arg3: memref<128x1024xbf16, #tpu.memory_space<vmem>>, %arg4: memref<1x1024xf32, #tpu.memory_space<vmem>>, %arg5: memref<16x1024xf32, #tpu.memory_space<vmem>>) attributes {dimension_semantics = [#tpu.dimension_semantics<parallel>, #tpu.dimension_semantics<parallel>], iteration_bounds = array<i64: 1, 1>, scalar_prefetch = 0 : i64, scratch_operands = 0 : i64, tpu.core_type = #tpu.core_type<tc>, window_params = [{transform_indices = @transform_0, window_bounds = array<i64: 16, 128>}, {pipeline_mode = #tpu.pipeline_mode<synchronous>, transform_indices = @transform_1, window_bounds = array<i64: 128, 1024>}, {pipeline_mode = #tpu.pipeline_mode<synchronous>, transform_indices = @transform_2, window_bounds = array<i64: 1, 1024>}, {transform_indices = @transform_3, window_bounds = array<i64: 16, 1024>}]} {
    %c0 = arith.constant 0 : index
    %c0_0 = arith.constant 0 : index
    %0 = vector.load %arg2[%c0, %c0_0] : memref<16x128xf32, #tpu.memory_space<vmem>>, vector<16x128xf32>
    %cst = arith.constant 1.750000e+00 : f32
    %1 = vector.broadcast %cst : f32 to vector<16x128xf32>
    %2 = arith.mulf %0, %1 : vector<16x128xf32>
    %3 = arith.truncf %2 : vector<16x128xf32> to vector<16x128xbf16>
    %4 = arith.extf %3 : vector<16x128xbf16> to vector<16x128xf32>
    %5 = arith.subf %2, %4 : vector<16x128xf32>
    %6 = arith.truncf %5 : vector<16x128xf32> to vector<16x128xbf16>
    %7 = arith.extf %6 : vector<16x128xbf16> to vector<16x128xf32>
    %8 = arith.subf %5, %7 : vector<16x128xf32>
    %9 = arith.truncf %8 : vector<16x128xf32> to vector<16x128xbf16>
    %c0_1 = arith.constant 0 : index
    %c0_2 = arith.constant 0 : index
    %10 = vector.load %arg3[%c0_1, %c0_2] : memref<128x1024xbf16, #tpu.memory_space<vmem>>, vector<128x1024xbf16>
    %cst_3 = arith.constant dense<0.000000e+00> : vector<16x1024xf32>
    %11 = tpu.matmul %3, %10, %cst_3 {dimension_numbers = #tpu.dot_dimension_numbers<[1], [0], [0], [1], [0, 0, 1, 1], [], []>} : vector<16x128xbf16>, vector<128x1024xbf16>, vector<16x1024xf32> -> vector<16x1024xf32>
    %cst_4 = arith.constant dense<0.000000e+00> : vector<16x1024xf32>
    %12 = tpu.matmul %6, %10, %cst_4 {dimension_numbers = #tpu.dot_dimension_numbers<[1], [0], [0], [1], [0, 0, 1, 1], [], []>} : vector<16x128xbf16>, vector<128x1024xbf16>, vector<16x1024xf32> -> vector<16x1024xf32>
    %13 = arith.addf %11, %12 : vector<16x1024xf32>
    %cst_5 = arith.constant dense<0.000000e+00> : vector<16x1024xf32>
    %14 = tpu.matmul %9, %10, %cst_5 {dimension_numbers = #tpu.dot_dimension_numbers<[1], [0], [0], [1], [0, 0, 1, 1], [], []>} : vector<16x128xbf16>, vector<128x1024xbf16>, vector<16x1024xf32> -> vector<16x1024xf32>
    %15 = arith.addf %13, %14 : vector<16x1024xf32>
    %c0_6 = arith.constant 0 : index
    %c0_7 = arith.constant 0 : index
    %16 = vector.load %arg4[%c0_6, %c0_7] : memref<1x1024xf32, #tpu.memory_space<vmem>>, vector<1x1024xf32>
    %17 = vector.broadcast %16 : vector<1x1024xf32> to vector<16x1024xf32>
    %18 = arith.subf %15, %17 : vector<16x1024xf32>
    %19 = arith.mulf %18, %18 : vector<16x1024xf32>
    %cst_8 = arith.constant 0.000000e+00 : f32
    %20 = vector.broadcast %cst_8 : f32 to vector<16x1024xf32>
    %21 = arith.subf %20, %19 : vector<16x1024xf32>
    %22 = math.exp %21 : vector<16x1024xf32>
    %c0_9 = arith.constant 0 : index
    %c0_10 = arith.constant 0 : index
    %23 = vector.load %arg5[%c0_9, %c0_10] : memref<16x1024xf32, #tpu.memory_space<vmem>>, vector<16x1024xf32>
    tpu.vector_store %arg5[%c0_9, %c0_10], %22 {strides = array<i32>} : memref<16x1024xf32, #tpu.memory_space<vmem>>, vector<16x1024xf32>,
    return
  }
  func.func @transform_0(%arg0: i32, %arg1: i32) -> (i32, i32) {
    %c0_i32 = arith.constant 0 : i32
    return %arg0, %arg1 : i32, i32
  }
  func.func @transform_1(%arg0: i32, %arg1: i32) -> (i32, i32) {
    %c0_i32 = arith.constant 0 : i32
    %c0_i32_0 = arith.constant 0 : i32
    %c0_i32_1 = arith.constant 0 : i32
    return %c0_i32, %c0_i32_0 : i32, i32
  }
  func.func @transform_2(%arg0: i32, %arg1: i32) -> (i32, i32) {
    %c0_i32 = arith.constant 0 : i32
    %c0_i32_0 = arith.constant 0 : i32
    %c0_i32_1 = arith.constant 0 : i32
    return %c0_i32, %c0_i32_0 : i32, i32
  }
  func.func @transform_3(%arg0: i32, %arg1: i32) -> (i32, i32) {
    %c0_i32 = arith.constant 0 : i32
    return %arg0, %arg1 : i32, i32
  }
}

</mosaic_0001>

<llo_original>
// kernel: tpu_custom_call.1
$region0: #{tpu_custom_call.1}
  #allocation0 [shape = 'u32[]', space=smem, size = 0x4, offset = 0x4, fixed_abs, tag = 'smem constant byte address 0x4 - core index']
  #allocation1 [shape = 'u32[144,128]{1,0:T(1,128)}', space=vmem, size = 0x12000, scoped, tag = 'internal scratch']
  %s0 = inlined_call_operand.hbm [shape: f32[16,128], index: 0, kind: input, shape index: {}]
  %s1 = inlined_call_operand.hbm [shape: bf16[128,1024], index: 1, kind: input, shape index: {}]
  %s2 = inlined_call_operand.hbm [shape: f32[1,1024], index: 2, kind: input, shape index: {}]
  %s3 = inlined_call_operand.hbm [shape: f32[16,1024], index: 3, kind: output, shape index: {}]
  %s4 = sld [smem:[#allocation0]]
  $region34: #{tpu_custom_call.1} parent=0
    _
  %s6 = ssub.s32 1, %s4
  %s7 = scalar_select 0, %s6, %s4
  $region1: #{tpu_custom_call.1} parent=0
    #allocation2 [shape = 'u8[8192]{0}', space=vmem, size = 0x2000, scoped, tag = 'input window, operand 0, single buffered']
    #allocation3 [shape = 's32[1]{0}', space=sflag, size = 0x4, scoped, tag = 'scoped memory for tpu_custom_call.1']
    #allocation4 [shape = 's32[1]{0}', space=sflag, size = 0x4, scoped, tag = 'scoped memory for tpu_custom_call.1']
    #allocation5 [shape = 'u8[262144]{0}', space=vmem, size = 0x40000, scoped, tag = 'input window, operand 1, single buffered']
    #allocation6 [shape = 's32[1]{0}', space=sflag, size = 0x4, scoped, tag = 'scoped memory for tpu_custom_call.1']
    #allocation7 [shape = 'u8[4096]{0}', space=vmem, size = 0x1000, scoped, tag = 'input window, operand 2, single buffered']
    #allocation8 [shape = 'u8[65536]{0}', space=vmem, size = 0x10000, scoped, tag = 'output window, operand 0, single buffered']
    %8 = vsyncpa [#allocation3], 0
    %9 = vsyncpa [#allocation6], 0
    %10 = vsyncpa [#allocation4], 0
    // Predicated region
    $region2: #{tpu_custom_call.1} parent=1 // pred_check
      _
    $region3: #{tpu_custom_call.1} parent=1 // pred_check_branch
      %12 = sbr.rel (0) target = $region5
    $region4: #{tpu_custom_call.1} parent=1 // pred_region
      %s14 = ssub.s32 256, 256
      %15 = vsyncadd [#allocation3], %s14
      %s16 = sshll.u32 [#allocation2], 4
      %s17 = int_to_ptr.vmem [resolvable:$true] %s16
      %22 = dma.hbm_to_vmem [thread:$0]  %s0, 256, %s17, [#allocation3], 128, 128, 8
    $region5: #{tpu_custom_call.1} parent=1 // pred_fallthru
      _
    // Predicated region
    $region6: #{tpu_custom_call.1} parent=1 // pred_check
      _
    $region7: #{tpu_custom_call.1} parent=1 // pred_check_branch
      %24 = sbr.rel (0) target = $region9
    $region8: #{tpu_custom_call.1} parent=1 // pred_region
      %s26 = ssub.s32 8192, 8192
      %27 = vsyncadd [#allocation6], %s26
      %s28 = sshll.u32 [#allocation5], 4
      %s29 = int_to_ptr.vmem [resolvable:$true] %s28
      %34 = dma.hbm_to_vmem [thread:$0]  %s1, 8192, %s29, [#allocation6], 512, 512, 32
    $region9: #{tpu_custom_call.1} parent=1 // pred_fallthru
      _
    // Predicated region
    $region10: #{tpu_custom_call.1} parent=1 // pred_check
      _
    $region11: #{tpu_custom_call.1} parent=1 // pred_check_branch
      %36 = sbr.rel (0) target = $region13
    $region12: #{tpu_custom_call.1} parent=1 // pred_region
      %s38 = ssub.s32 128, 128
      %39 = vsyncadd [#allocation6], %s38
      %s41 = sshll.u32 [#allocation7], 4
      %s42 = int_to_ptr.vmem [resolvable:$true] %s41
      %44 = dma.hbm_to_vmem [thread:$0]  %s2, 128, %s42, [#allocation6]
    $region13: #{tpu_custom_call.1} parent=1 // pred_fallthru
      _
    // Predicated region
    $region14: #{tpu_custom_call.1} parent=1 // pred_check
      _
    $region15: #{tpu_custom_call.1} parent=1 // pred_check_branch
      %46 = sbr.rel (0) target = $region17
    $region16: #{tpu_custom_call.1} parent=1 // pred_region
      %47 = dma.done [#allocation3], 256
    $region17: #{tpu_custom_call.1} parent=1 // pred_fallthru
      _
    // Predicated region
    $region18: #{tpu_custom_call.1} parent=1 // pred_check
      _
    $region19: #{tpu_custom_call.1} parent=1 // pred_check_branch
      %49 = sbr.rel (0) target = $region21
    $region20: #{tpu_custom_call.1} parent=1 // pred_region
      %50 = dma.done [#allocation6], 8192
    $region21: #{tpu_custom_call.1} parent=1 // pred_fallthru
      _
    // Predicated region
    $region22: #{tpu_custom_call.1} parent=1 // pred_check
      _
    $region23: #{tpu_custom_call.1} parent=1 // pred_check_branch
      %52 = sbr.rel (0) target = $region25
    $region24: #{tpu_custom_call.1} parent=1 // pred_region
      %53 = dma.done [#allocation6], 128
    $region25: #{tpu_custom_call.1} parent=1 // pred_fallthru
      _
    %v55 = vld [vmem:[#allocation2] sm:$0xff]
    %v56 = vld [vmem:[#allocation2 + $0x8] sm:$0xff]
    %v57 = vmul.f32 %v55, 1.75
    %v58 = vmul.f32 %v56, 1.75
    %v59 = vpack.c.bf16 %v58, %v57
    %v60 = vunpack.c.l.bf16 %v59
    %v61 = vunpack.c.h.bf16 %v59
    %v62 = vsub.f32 %v57, %v60
    %v63 = vsub.f32 %v58, %v61
    %v64 = vpack.c.bf16 %v63, %v62
    %v65 = vunpack.c.l.bf16 %v64
    %v66 = vunpack.c.h.bf16 %v64
    %v67 = vsub.f32 %v62, %v65
    %v68 = vsub.f32 %v63, %v66
    %v69 = vpack.c.bf16 %v68, %v67
    %v70 = vld [vmem:[#allocation5] sm:$0xff]
    %v71 = vld [vmem:[#allocation5 + $0x8] sm:$0xff]
    %v72 = vld [vmem:[#allocation5 + $0x10] sm:$0xff]
    %v73 = vld [vmem:[#allocation5 + $0x18] sm:$0xff]
    %v74 = vld [vmem:[#allocation5 + $0x20] sm:$0xff]
    %v75 = vld [vmem:[#allocation5 + $0x28] sm:$0xff]
    %v76 = vld [vmem:[#allocation5 + $0x30] sm:$0xff]
    %v77 = vld [vmem:[#allocation5 + $0x38] sm:$0xff]
    %v78 = vld [vmem:[#allocation5 + $0x40] sm:$0xff]
    %v79 = vld [vmem:[#allocation5 + $0x48] sm:$0xff]
    %v80 = vld [vmem:[#allocation5 + $0x50] sm:$0xff]
    %v81 = vld [vmem:[#allocation5 + $0x58] sm:$0xff]
    %v82 = vld [vmem:[#allocation5 + $0x60] sm:$0xff]
    %v83 = vld [vmem:[#allocation5 + $0x68] sm:$0xff]
    %v84 = vld [vmem:[#allocation5 + $0x70] sm:$0xff]
    %v85 = vld [vmem:[#allocation5 + $0x78] sm:$0xff]
    %v86 = vld [vmem:[#allocation5 + $0x80] sm:$0xff]
    %v87 = vld [vmem:[#allocation5 + $0x88] sm:$0xff]
    %v88 = vld [vmem:[#allocation5 + $0x90] sm:$0xff]
    %v89 = vld [vmem:[#allocation5 + $0x98] sm:$0xff]
    %v90 = vld [vmem:[#allocation5 + $0xa0] sm:$0xff]
    %v91 = vld [vmem:[#allocation5 + $0xa8] sm:$0xff]
    %v92 = vld [vmem:[#allocation5 + $0xb0] sm:$0xff]
    %v93 = vld [vmem:[#allocation5 + $0xb8] sm:$0xff]
    %v94 = vld [vmem:[#allocation5 + $0xc0] sm:$0xff]
    %v95 = vld [vmem:[#allocation5 + $0xc8] sm:$0xff]
    %v96 = vld [vmem:[#allocation5 + $0xd0] sm:$0xff]
    %v97 = vld [vmem:[#allocation5 + $0xd8] sm:$0xff]
    %v98 = vld [vmem:[#allocation5 + $0xe0] sm:$0xff]
    %v99 = vld [vmem:[#allocation5 + $0xe8] sm:$0xff]
    %v100 = vld [vmem:[#allocation5 + $0xf0] sm:$0xff]
    %v101 = vld [vmem:[#allocation5 + $0xf8] sm:$0xff]
    %v102 = vld [vmem:[#allocation5 + $0x100] sm:$0xff]
    %v103 = vld [vmem:[#allocation5 + $0x108] sm:$0xff]
    %v104 = vld [vmem:[#allocation5 + $0x110] sm:$0xff]
    %v105 = vld [vmem:[#allocation5 + $0x118] sm:$0xff]
    %v106 = vld [vmem:[#allocation5 + $0x120] sm:$0xff]
    %v107 = vld [vmem:[#allocation5 + $0x128] sm:$0xff]
    %v108 = vld [vmem:[#allocation5 + $0x130] sm:$0xff]
    %v109 = vld [vmem:[#allocation5 + $0x138] sm:$0xff]
    %v110 = vld [vmem:[#allocation5 + $0x140] sm:$0xff]
    %v111 = vld [vmem:[#allocation5 + $0x148] sm:$0xff]
    %v112 = vld [vmem:[#allocation5 + $0x150] sm:$0xff]
    %v113 = vld [vmem:[#allocation5 + $0x158] sm:$0xff]
    %v114 = vld [vmem:[#allocation5 + $0x160] sm:$0xff]
    %v115 = vld [vmem:[#allocation5 + $0x168] sm:$0xff]
    %v116 = vld [vmem:[#allocation5 + $0x170] sm:$0xff]
    %v117 = vld [vmem:[#allocation5 + $0x178] sm:$0xff]
    %v118 = vld [vmem:[#allocation5 + $0x180] sm:$0xff]
    %v119 = vld [vmem:[#allocation5 + $0x188] sm:$0xff]
    %v120 = vld [vmem:[#allocation5 + $0x190] sm:$0xff]
    %v121 = vld [vmem:[#allocation5 + $0x198] sm:$0xff]
    %v122 = vld [vmem:[#allocation5 + $0x1a0] sm:$0xff]
    %v123 = vld [vmem:[#allocation5 + $0x1a8] sm:$0xff]
    %v124 = vld [vmem:[#allocation5 + $0x1b0] sm:$0xff]
    %v125 = vld [vmem:[#allocation5 + $0x1b8] sm:$0xff]
    %v126 = vld [vmem:[#allocation5 + $0x1c0] sm:$0xff]
    %v127 = vld [vmem:[#allocation5 + $0x1c8] sm:$0xff]
    %v128 = vld [vmem:[#allocation5 + $0x1d0] sm:$0xff]
    %v129 = vld [vmem:[#allocation5 + $0x1d8] sm:$0xff]
    %v130 = vld [vmem:[#allocation5 + $0x1e0] sm:$0xff]
    %v131 = vld [vmem:[#allocation5 + $0x1e8] sm:$0xff]
    %v132 = vld [vmem:[#allocation5 + $0x1f0] sm:$0xff]
    %v133 = vld [vmem:[#allocation5 + $0x1f8] sm:$0xff]
    %v198 = vunpack.c.l.b16 %v70
    %v199 = vunpack.c.h.b16 %v70
    %v200 = vunpack.c.l.b16 %v71
    %v201 = vunpack.c.h.b16 %v71
    %v202 = vunpack.c.l.b16 %v72
    %v203 = vunpack.c.h.b16 %v72
    %v204 = vunpack.c.l.b16 %v73
    %v205 = vunpack.c.h.b16 %v73
    %v206 = vunpack.c.l.b16 %v74
    %v207 = vunpack.c.h.b16 %v74
    %v208 = vunpack.c.l.b16 %v75
    %v209 = vunpack.c.h.b16 %v75
    %v210 = vunpack.c.l.b16 %v76
    %v211 = vunpack.c.h.b16 %v76
    %v212 = vunpack.c.l.b16 %v77
    %v213 = vunpack.c.h.b16 %v77
    %v214 = vunpack.c.l.b16 %v78
    %v215 = vunpack.c.h.b16 %v78
    %v216 = vunpack.c.l.b16 %v79
    %v217 = vunpack.c.h.b16 %v79
    %v218 = vunpack.c.l.b16 %v80
    %v219 = vunpack.c.h.b16 %v80
    %v220 = vunpack.c.l.b16 %v81
    %v221 = vunpack.c.h.b16 %v81
    %v222 = vunpack.c.l.b16 %v82
    %v223 = vunpack.c.h.b16 %v82
    %v224 = vunpack.c.l.b16 %v83
    %v225 = vunpack.c.h.b16 %v83
    %v226 = vunpack.c.l.b16 %v84
    %v227 = vunpack.c.h.b16 %v84
    %v228 = vunpack.c.l.b16 %v85
    %v229 = vunpack.c.h.b16 %v85
    %v230 = vunpack.c.l.b16 %v86
    %v231 = vunpack.c.h.b16 %v86
    %v232 = vunpack.c.l.b16 %v87
    %v233 = vunpack.c.h.b16 %v87
    %v234 = vunpack.c.l.b16 %v88
    %v235 = vunpack.c.h.b16 %v88
    %v236 = vunpack.c.l.b16 %v89
    %v237 = vunpack.c.h.b16 %v89
    %v238 = vunpack.c.l.b16 %v90
    %v239 = vunpack.c.h.b16 %v90
    %v240 = vunpack.c.l.b16 %v91
    %v241 = vunpack.c.h.b16 %v91
    %v242 = vunpack.c.l.b16 %v92
    %v243 = vunpack.c.h.b16 %v92
    %v244 = vunpack.c.l.b16 %v93
    %v245 = vunpack.c.h.b16 %v93
    %v246 = vunpack.c.l.b16 %v94
    %v247 = vunpack.c.h.b16 %v94
    %v248 = vunpack.c.l.b16 %v95
    %v249 = vunpack.c.h.b16 %v95
    %v250 = vunpack.c.l.b16 %v96
    %v251 = vunpack.c.h.b16 %v96
    %v252 = vunpack.c.l.b16 %v97
    %v253 = vunpack.c.h.b16 %v97
    %v254 = vunpack.c.l.b16 %v98
    %v255 = vunpack.c.h.b16 %v98
    %v256 = vunpack.c.l.b16 %v99
    %v257 = vunpack.c.h.b16 %v99
    %v258 = vunpack.c.l.b16 %v100
    %v259 = vunpack.c.h.b16 %v100
    %v260 = vunpack.c.l.b16 %v101
    %v261 = vunpack.c.h.b16 %v101
    %v262 = vunpack.c.l.b16 %v102
    %v263 = vunpack.c.h.b16 %v102
    %v264 = vunpack.c.l.b16 %v103
    %v265 = vunpack.c.h.b16 %v103
    %v266 = vunpack.c.l.b16 %v104
    %v267 = vunpack.c.h.b16 %v104
    %v268 = vunpack.c.l.b16 %v105
    %v269 = vunpack.c.h.b16 %v105
    %v270 = vunpack.c.l.b16 %v106
    %v271 = vunpack.c.h.b16 %v106
    %v272 = vunpack.c.l.b16 %v107
    %v273 = vunpack.c.h.b16 %v107
    %v274 = vunpack.c.l.b16 %v108
    %v275 = vunpack.c.h.b16 %v108
    %v276 = vunpack.c.l.b16 %v109
    %v277 = vunpack.c.h.b16 %v109
    %v278 = vunpack.c.l.b16 %v110
    %v279 = vunpack.c.h.b16 %v110
    %v280 = vunpack.c.l.b16 %v111
    %v281 = vunpack.c.h.b16 %v111
    %v282 = vunpack.c.l.b16 %v112
    %v283 = vunpack.c.h.b16 %v112
    %v284 = vunpack.c.l.b16 %v113
    %v285 = vunpack.c.h.b16 %v113
    %v286 = vunpack.c.l.b16 %v114
    %v287 = vunpack.c.h.b16 %v114
    %v288 = vunpack.c.l.b16 %v115
    %v289 = vunpack.c.h.b16 %v115
    %v290 = vunpack.c.l.b16 %v116
    %v291 = vunpack.c.h.b16 %v116
    %v292 = vunpack.c.l.b16 %v117
    %v293 = vunpack.c.h.b16 %v117
    %v294 = vunpack.c.l.b16 %v118
    %v295 = vunpack.c.h.b16 %v118
    %v296 = vunpack.c.l.b16 %v119
    %v297 = vunpack.c.h.b16 %v119
    %v298 = vunpack.c.l.b16 %v120
    %v299 = vunpack.c.h.b16 %v120
    %v300 = vunpack.c.l.b16 %v121
    %v301 = vunpack.c.h.b16 %v121
    %v302 = vunpack.c.l.b16 %v122
    %v303 = vunpack.c.h.b16 %v122
    %v304 = vunpack.c.l.b16 %v123
    %v305 = vunpack.c.h.b16 %v123
    %v306 = vunpack.c.l.b16 %v124
    %v307 = vunpack.c.h.b16 %v124
    %v308 = vunpack.c.l.b16 %v125
    %v309 = vunpack.c.h.b16 %v125
    %v310 = vunpack.c.l.b16 %v126
    %v311 = vunpack.c.h.b16 %v126
    %v312 = vunpack.c.l.b16 %v127
    %v313 = vunpack.c.h.b16 %v127
    %v314 = vunpack.c.l.b16 %v128
    %v315 = vunpack.c.h.b16 %v128
    %v316 = vunpack.c.l.b16 %v129
    %v317 = vunpack.c.h.b16 %v129
    %v318 = vunpack.c.l.b16 %v130
    %v319 = vunpack.c.h.b16 %v130
    %v320 = vunpack.c.l.b16 %v131
    %v321 = vunpack.c.h.b16 %v131
    %v322 = vunpack.c.l.b16 %v132
    %v323 = vunpack.c.h.b16 %v132
    %v324 = vunpack.c.l.b16 %v133
    %v325 = vunpack.c.h.b16 %v133
    %v326 = vpack.c.b16 %v206, %v198
    %v327 = vpack.c.b16 %v207, %v199
    %v328 = vpack.c.b16 %v208, %v200
    %v329 = vpack.c.b16 %v209, %v201
    %v330 = vpack.c.b16 %v210, %v202
    %v331 = vpack.c.b16 %v211, %v203
    %v332 = vpack.c.b16 %v212, %v204
    %v333 = vpack.c.b16 %v213, %v205
    %v334 = vpack.c.b16 %v222, %v214
    %v335 = vpack.c.b16 %v223, %v215
    %v336 = vpack.c.b16 %v224, %v216
    %v337 = vpack.c.b16 %v225, %v217
    %v338 = vpack.c.b16 %v226, %v218
    %v339 = vpack.c.b16 %v227, %v219
    %v340 = vpack.c.b16 %v228, %v220
    %v341 = vpack.c.b16 %v229, %v221
    %v342 = vpack.c.b16 %v238, %v230
    %v343 = vpack.c.b16 %v239, %v231
    %v344 = vpack.c.b16 %v240, %v232
    %v345 = vpack.c.b16 %v241, %v233
    %v346 = vpack.c.b16 %v242, %v234
    %v347 = vpack.c.b16 %v243, %v235
    %v348 = vpack.c.b16 %v244, %v236
    %v349 = vpack.c.b16 %v245, %v237
    %v350 = vpack.c.b16 %v254, %v246
    %v351 = vpack.c.b16 %v255, %v247
    %v352 = vpack.c.b16 %v256, %v248
    %v353 = vpack.c.b16 %v257, %v249
    %v354 = vpack.c.b16 %v258, %v250
    %v355 = vpack.c.b16 %v259, %v251
    %v356 = vpack.c.b16 %v260, %v252
    %v357 = vpack.c.b16 %v261, %v253
    %v358 = vpack.c.b16 %v270, %v262
    %v359 = vpack.c.b16 %v271, %v263
    %v360 = vpack.c.b16 %v272, %v264
    %v361 = vpack.c.b16 %v273, %v265
    %v362 = vpack.c.b16 %v274, %v266
    %v363 = vpack.c.b16 %v275, %v267
    %v364 = vpack.c.b16 %v276, %v268
    %v365 = vpack.c.b16 %v277, %v269
    %v366 = vpack.c.b16 %v286, %v278
    %v367 = vpack.c.b16 %v287, %v279
    %v368 = vpack.c.b16 %v288, %v280
    %v369 = vpack.c.b16 %v289, %v281
    %v370 = vpack.c.b16 %v290, %v282
    %v371 = vpack.c.b16 %v291, %v283
    %v372 = vpack.c.b16 %v292, %v284
    %v373 = vpack.c.b16 %v293, %v285
    %v374 = vpack.c.b16 %v302, %v294
    %v375 = vpack.c.b16 %v303, %v295
    %v376 = vpack.c.b16 %v304, %v296
    %v377 = vpack.c.b16 %v305, %v297
    %v378 = vpack.c.b16 %v306, %v298
    %v379 = vpack.c.b16 %v307, %v299
    %v380 = vpack.c.b16 %v308, %v300
    %v381 = vpack.c.b16 %v309, %v301
    %v382 = vpack.c.b16 %v318, %v310
    %v383 = vpack.c.b16 %v319, %v311
    %v384 = vpack.c.b16 %v320, %v312
    %v385 = vpack.c.b16 %v321, %v313
    %v386 = vpack.c.b16 %v322, %v314
    %v387 = vpack.c.b16 %v323, %v315
    %v388 = vpack.c.b16 %v324, %v316
    %v389 = vpack.c.b16 %v325, %v317
    %454 = vmatprep.subr.bf16.mxu0 %v327
    %455 = vmatpush1.bf16.msra.mxu0 %v326
    %456 = vmatprep.subr.bf16.mxu0 %v335
    %457 = vmatpush1.bf16.msra.mxu0 %v334
    %458 = vmatprep.subr.bf16.mxu0 %v343
    %459 = vmatpush1.bf16.msra.mxu0 %v342
    %460 = vmatprep.subr.bf16.mxu0 %v351
    %461 = vmatpush1.bf16.msra.mxu0 %v350
    %462 = vmatprep.subr.bf16.mxu0 %v359
    %463 = vmatpush1.bf16.msra.mxu0 %v358
    %464 = vmatprep.subr.bf16.mxu0 %v367
    %465 = vmatpush1.bf16.msra.mxu0 %v366
    %466 = vmatprep.subr.bf16.mxu0 %v375
    %467 = vmatpush1.bf16.msra.mxu0 %v374
    %468 = vmatprep.subr.bf16.mxu0 %v383
    %469 = vmatpush1.bf16.msra.mxu0 %v382
    %470 = vmatprep.subr.bf16.mxu0 0
    %471 = vmatpush1.bf16.msra.mxu0 0
    %472 = vmatprep.subr.bf16.mxu0 0
    %473 = vmatpush1.bf16.msra.mxu0 0
    %474 = vmatprep.subr.bf16.mxu0 0
    %475 = vmatpush1.bf16.msra.mxu0 0
    %476 = vmatprep.subr.bf16.mxu0 0
    %477 = vmatpush1.bf16.msra.mxu0 0
    %478 = vmatprep.subr.bf16.mxu0 0
    %479 = vmatpush1.bf16.msra.mxu0 0
    %480 = vmatprep.subr.bf16.mxu0 0
    %481 = vmatpush1.bf16.msra.mxu0 0
    %482 = vmatprep.subr.bf16.mxu0 0
    %483 = vmatpush1.bf16.msra.mxu0 0
    %484 = vmatprep.subr.bf16.mxu0 0
    %485 = vmatpush1.bf16.msra.mxu0 0
    %486 = vmatprep.mubr.bf16.mxu0 0
    %487 = vmatmul.mubr.bf16.gmra.mrb[0].mxu0 %v64
    %v488 = vpop.f32.mrb[0].mxu0
    %v489 = vadd.f32 0.0, %v488
    %v490 = vpop.f32.mrb[0].mxu0
    %v491 = vadd.f32 0.0, %v490
    %v492 = vpop.f32.mrb[0].mxu0
    %v493 = vadd.f32 0.0, %v492
    %v494 = vpop.f32.mrb[0].mxu0
    %v495 = vadd.f32 0.0, %v494
    %496 = vdwg.mxu0
    %497 = vmatprep.subr.bf16.mxu0 %v329
    %498 = vmatpush1.bf16.msra.mxu0 %v328
    %499 = vmatprep.subr.bf16.mxu0 %v337
    %500 = vmatpush1.bf16.msra.mxu0 %v336
    %501 = vmatprep.subr.bf16.mxu0 %v345
    %502 = vmatpush1.bf16.msra.mxu0 %v344
    %503 = vmatprep.subr.bf16.mxu0 %v353
    %504 = vmatpush1.bf16.msra.mxu0 %v352
    %505 = vmatprep.subr.bf16.mxu0 %v361
    %506 = vmatpush1.bf16.msra.mxu0 %v360
    %507 = vmatprep.subr.bf16.mxu0 %v369
    %508 = vmatpush1.bf16.msra.mxu0 %v368
    %509 = vmatprep.subr.bf16.mxu0 %v377
    %510 = vmatpush1.bf16.msra.mxu0 %v376
    %511 = vmatprep.subr.bf16.mxu0 %v385
    %512 = vmatpush1.bf16.msra.mxu0 %v384
    %513 = vmatprep.subr.bf16.mxu0 0
    %514 = vmatpush1.bf16.msra.mxu0 0
    %515 = vmatprep.subr.bf16.mxu0 0
    %516 = vmatpush1.bf16.msra.mxu0 0
    %517 = vmatprep.subr.bf16.mxu0 0
    %518 = vmatpush1.bf16.msra.mxu0 0
    %519 = vmatprep.subr.bf16.mxu0 0
    %520 = vmatpush1.bf16.msra.mxu0 0
    %521 = vmatprep.subr.bf16.mxu0 0
    %522 = vmatpush1.bf16.msra.mxu0 0
    %523 = vmatprep.subr.bf16.mxu0 0
    %524 = vmatpush1.bf16.msra.mxu0 0
    %525 = vmatprep.subr.bf16.mxu0 0
    %526 = vmatpush1.bf16.msra.mxu0 0
    %527 = vmatprep.subr.bf16.mxu0 0
    %528 = vmatpush1.bf16.msra.mxu0 0
    %529 = vmatprep.mubr.bf16.mxu0 0
    %530 = vmatmul.mubr.bf16.gmra.mrb[0].mxu0 %v64
    %v531 = vpop.f32.mrb[0].mxu0
    %v532 = vadd.f32 0.0, %v531
    %v533 = vpop.f32.mrb[0].mxu0
    %v534 = vadd.f32 0.0, %v533
    %v535 = vpop.f32.mrb[0].mxu0
    %v536 = vadd.f32 0.0, %v535
    %v537 = vpop.f32.mrb[0].mxu0
    %v538 = vadd.f32 0.0, %v537
    %539 = vdwg.mxu0
    %540 = vmatprep.subr.bf16.mxu0 %v331
    %541 = vmatpush1.bf16.msra.mxu0 %v330
    %542 = vmatprep.subr.bf16.mxu0 %v339
    %543 = vmatpush1.bf16.msra.mxu0 %v338
    %544 = vmatprep.subr.bf16.mxu0 %v347
    %545 = vmatpush1.bf16.msra.mxu0 %v346
    %546 = vmatprep.subr.bf16.mxu0 %v355
    %547 = vmatpush1.bf16.msra.mxu0 %v354
    %548 = vmatprep.subr.bf16.mxu0 %v363
    %549 = vmatpush1.bf16.msra.mxu0 %v362
    %550 = vmatprep.subr.bf16.mxu0 %v371
    %551 = vmatpush1.bf16.msra.mxu0 %v370
    %552 = vmatprep.subr.bf16.mxu0 %v379
    %553 = vmatpush1.bf16.msra.mxu0 %v378
    %554 = vmatprep.subr.bf16.mxu0 %v387
    %555 = vmatpush1.bf16.msra.mxu0 %v386
    %556 = vmatprep.subr.bf16.mxu0 0
    %557 = vmatpush1.bf16.msra.mxu0 0
    %558 = vmatprep.subr.bf16.mxu0 0
    %559 = vmatpush1.bf16.msra.mxu0 0
    %560 = vmatprep.subr.bf16.mxu0 0
    %561 = vmatpush1.bf16.msra.mxu0 0
    %562 = vmatprep.subr.bf16.mxu0 0
    %563 = vmatpush1.bf16.msra.mxu0 0
    %564 = vmatprep.subr.bf16.mxu0 0
    %565 = vmatpush1.bf16.msra.mxu0 0
    %566 = vmatprep.subr.bf16.mxu0 0
    %567 = vmatpush1.bf16.msra.mxu0 0
    %568 = vmatprep.subr.bf16.mxu0 0
    %569 = vmatpush1.bf16.msra.mxu0 0
    %570 = vmatprep.subr.bf16.mxu0 0
    %571 = vmatpush1.bf16.msra.mxu0 0
    %572 = vmatprep.mubr.bf16.mxu0 0
    %573 = vmatmul.mubr.bf16.gmra.mrb[0].mxu0 %v64
    %v574 = vpop.f32.mrb[0].mxu0
    %v575 = vadd.f32 0.0, %v574
    %v576 = vpop.f32.mrb[0].mxu0
    %v577 = vadd.f32 0.0, %v576
    %v578 = vpop.f32.mrb[0].mxu0
    %v579 = vadd.f32 0.0, %v578
    %v580 = vpop.f32.mrb[0].mxu0
    %v581 = vadd.f32 0.0, %v580
    %582 = vdwg.mxu0
    %583 = vmatprep.subr.bf16.mxu0 %v333
    %584 = vmatpush1.bf16.msra.mxu0 %v332
    %585 = vmatprep.subr.bf16.mxu0 %v341
    %586 = vmatpush1.bf16.msra.mxu0 %v340
    %587 = vmatprep.subr.bf16.mxu0 %v349
    %588 = vmatpush1.bf16.msra.mxu0 %v348
    %589 = vmatprep.subr.bf16.mxu0 %v357
    %590 = vmatpush1.bf16.msra.mxu0 %v356
    %591 = vmatprep.subr.bf16.mxu0 %v365
    %592 = vmatpush1.bf16.msra.mxu0 %v364
    %593 = vmatprep.subr.bf16.mxu0 %v373
    %594 = vmatpush1.bf16.msra.mxu0 %v372
    %595 = vmatprep.subr.bf16.mxu0 %v381
    %596 = vmatpush1.bf16.msra.mxu0 %v380
    %597 = vmatprep.subr.bf16.mxu0 %v389
    %598 = vmatpush1.bf16.msra.mxu0 %v388
    %599 = vmatprep.subr.bf16.mxu0 0
    %600 = vmatpush1.bf16.msra.mxu0 0
    %601 = vmatprep.subr.bf16.mxu0 0
    %602 = vmatpush1.bf16.msra.mxu0 0
    %603 = vmatprep.subr.bf16.mxu0 0
    %604 = vmatpush1.bf16.msra.mxu0 0
    %605 = vmatprep.subr.bf16.mxu0 0
    %606 = vmatpush1.bf16.msra.mxu0 0
    %607 = vmatprep.subr.bf16.mxu0 0
    %608 = vmatpush1.bf16.msra.mxu0 0
    %609 = vmatprep.subr.bf16.mxu0 0
    %610 = vmatpush1.bf16.msra.mxu0 0
    %611 = vmatprep.subr.bf16.mxu0 0
    %612 = vmatpush1.bf16.msra.mxu0 0
    %613 = vmatprep.subr.bf16.mxu0 0
    %614 = vmatpush1.bf16.msra.mxu0 0
    %615 = vmatprep.mubr.bf16.mxu0 0
    %616 = vmatmul.mubr.bf16.gmra.mrb[0].mxu0 %v64
    %v617 = vpop.f32.mrb[0].mxu0
    %v618 = vadd.f32 0.0, %v617
    %v619 = vpop.f32.mrb[0].mxu0
    %v620 = vadd.f32 0.0, %v619
    %v621 = vpop.f32.mrb[0].mxu0
    %v622 = vadd.f32 0.0, %v621
    %v623 = vpop.f32.mrb[0].mxu0
    %v624 = vadd.f32 0.0, %v623
    %625 = vdwg.mxu0
    %626 = vmatprep.subr.bf16.mxu0 %v327
    %627 = vmatpush1.bf16.msra.mxu0 %v326
    %628 = vmatprep.subr.bf16.mxu0 %v335
    %629 = vmatpush1.bf16.msra.mxu0 %v334
    %630 = vmatprep.subr.bf16.mxu0 %v343
    %631 = vmatpush1.bf16.msra.mxu0 %v342
    %632 = vmatprep.subr.bf16.mxu0 %v351
    %633 = vmatpush1.bf16.msra.mxu0 %v350
    %634 = vmatprep.subr.bf16.mxu0 %v359
    %635 = vmatpush1.bf16.msra.mxu0 %v358
    %636 = vmatprep.subr.bf16.mxu0 %v367
    %637 = vmatpush1.bf16.msra.mxu0 %v366
    %638 = vmatprep.subr.bf16.mxu0 %v375
    %639 = vmatpush1.bf16.msra.mxu0 %v374
    %640 = vmatprep.subr.bf16.mxu0 %v383
    %641 = vmatpush1.bf16.msra.mxu0 %v382
    %642 = vmatprep.subr.bf16.mxu0 0
    %643 = vmatpush1.bf16.msra.mxu0 0
    %644 = vmatprep.subr.bf16.mxu0 0
    %645 = vmatpush1.bf16.msra.mxu0 0
    %646 = vmatprep.subr.bf16.mxu0 0
    %647 = vmatpush1.bf16.msra.mxu0 0
    %648 = vmatprep.subr.bf16.mxu0 0
    %649 = vmatpush1.bf16.msra.mxu0 0
    %650 = vmatprep.subr.bf16.mxu0 0
    %651 = vmatpush1.bf16.msra.mxu0 0
    %652 = vmatprep.subr.bf16.mxu0 0
    %653 = vmatpush1.bf16.msra.mxu0 0
    %654 = vmatprep.subr.bf16.mxu0 0
    %655 = vmatpush1.bf16.msra.mxu0 0
    %656 = vmatprep.subr.bf16.mxu0 0
    %657 = vmatpush1.bf16.msra.mxu0 0
    %658 = vmatprep.mubr.bf16.mxu0 0
    %659 = vmatmul.mubr.bf16.gmra.mrb[0].mxu0 %v59
    %v660 = vpop.f32.mrb[0].mxu0
    %v661 = vadd.f32 %v489, %v660
    %v662 = vpop.f32.mrb[0].mxu0
    %v663 = vadd.f32 %v491, %v662
    %v664 = vpop.f32.mrb[0].mxu0
    %v665 = vadd.f32 %v493, %v664
    %v666 = vpop.f32.mrb[0].mxu0
    %v667 = vadd.f32 %v495, %v666
    %668 = vdwg.mxu0
    %669 = vmatprep.subr.bf16.mxu0 %v329
    %670 = vmatpush1.bf16.msra.mxu0 %v328
    %671 = vmatprep.subr.bf16.mxu0 %v337
    %672 = vmatpush1.bf16.msra.mxu0 %v336
    %673 = vmatprep.subr.bf16.mxu0 %v345
    %674 = vmatpush1.bf16.msra.mxu0 %v344
    %675 = vmatprep.subr.bf16.mxu0 %v353
    %676 = vmatpush1.bf16.msra.mxu0 %v352
    %677 = vmatprep.subr.bf16.mxu0 %v361
    %678 = vmatpush1.bf16.msra.mxu0 %v360
    %679 = vmatprep.subr.bf16.mxu0 %v369
    %680 = vmatpush1.bf16.msra.mxu0 %v368
    %681 = vmatprep.subr.bf16.mxu0 %v377
    %682 = vmatpush1.bf16.msra.mxu0 %v376
    %683 = vmatprep.subr.bf16.mxu0 %v385
    %684 = vmatpush1.bf16.msra.mxu0 %v384
    %685 = vmatprep.subr.bf16.mxu0 0
    %686 = vmatpush1.bf16.msra.mxu0 0
    %687 = vmatprep.subr.bf16.mxu0 0
    %688 = vmatpush1.bf16.msra.mxu0 0
    %689 = vmatprep.subr.bf16.mxu0 0
    %690 = vmatpush1.bf16.msra.mxu0 0
    %691 = vmatprep.subr.bf16.mxu0 0
    %692 = vmatpush1.bf16.msra.mxu0 0
    %693 = vmatprep.subr.bf16.mxu0 0
    %694 = vmatpush1.bf16.msra.mxu0 0
    %695 = vmatprep.subr.bf16.mxu0 0
    %696 = vmatpush1.bf16.msra.mxu0 0
    %697 = vmatprep.subr.bf16.mxu0 0
    %698 = vmatpush1.bf16.msra.mxu0 0
    %699 = vmatprep.subr.bf16.mxu0 0
    %700 = vmatpush1.bf16.msra.mxu0 0
    %701 = vmatprep.mubr.bf16.mxu0 0
    %702 = vmatmul.mubr.bf16.gmra.mrb[0].mxu0 %v59
    %v703 = vpop.f32.mrb[0].mxu0
    %v704 = vadd.f32 %v532, %v703
    %v705 = vpop.f32.mrb[0].mxu0
    %v706 = vadd.f32 %v534, %v705
    %v707 = vpop.f32.mrb[0].mxu0
    %v708 = vadd.f32 %v536, %v707
    %v709 = vpop.f32.mrb[0].mxu0
    %v710 = vadd.f32 %v538, %v709
    %711 = vdwg.mxu0
    %712 = vmatprep.subr.bf16.mxu0 %v331
    %713 = vmatpush1.bf16.msra.mxu0 %v330
    %714 = vmatprep.subr.bf16.mxu0 %v339
    %715 = vmatpush1.bf16.msra.mxu0 %v338
    %716 = vmatprep.subr.bf16.mxu0 %v347
    %717 = vmatpush1.bf16.msra.mxu0 %v346
    %718 = vmatprep.subr.bf16.mxu0 %v355
    %719 = vmatpush1.bf16.msra.mxu0 %v354
    %720 = vmatprep.subr.bf16.mxu0 %v363
    %721 = vmatpush1.bf16.msra.mxu0 %v362
    %722 = vmatprep.subr.bf16.mxu0 %v371
    %723 = vmatpush1.bf16.msra.mxu0 %v370
    %724 = vmatprep.subr.bf16.mxu0 %v379
    %725 = vmatpush1.bf16.msra.mxu0 %v378
    %726 = vmatprep.subr.bf16.mxu0 %v387
    %727 = vmatpush1.bf16.msra.mxu0 %v386
    %728 = vmatprep.subr.bf16.mxu0 0
    %729 = vmatpush1.bf16.msra.mxu0 0
    %730 = vmatprep.subr.bf16.mxu0 0
    %731 = vmatpush1.bf16.msra.mxu0 0
    %732 = vmatprep.subr.bf16.mxu0 0
    %733 = vmatpush1.bf16.msra.mxu0 0
    %734 = vmatprep.subr.bf16.mxu0 0
    %735 = vmatpush1.bf16.msra.mxu0 0
    %736 = vmatprep.subr.bf16.mxu0 0
    %737 = vmatpush1.bf16.msra.mxu0 0
    %738 = vmatprep.subr.bf16.mxu0 0
    %739 = vmatpush1.bf16.msra.mxu0 0
    %740 = vmatprep.subr.bf16.mxu0 0
    %741 = vmatpush1.bf16.msra.mxu0 0
    %742 = vmatprep.subr.bf16.mxu0 0
    %743 = vmatpush1.bf16.msra.mxu0 0
    %744 = vmatprep.mubr.bf16.mxu0 0
    %745 = vmatmul.mubr.bf16.gmra.mrb[0].mxu0 %v59
    %v746 = vpop.f32.mrb[0].mxu0
    %v747 = vadd.f32 %v575, %v746
    %v748 = vpop.f32.mrb[0].mxu0
    %v749 = vadd.f32 %v577, %v748
    %v750 = vpop.f32.mrb[0].mxu0
    %v751 = vadd.f32 %v579, %v750
    %v752 = vpop.f32.mrb[0].mxu0
    %v753 = vadd.f32 %v581, %v752
    %754 = vdwg.mxu0
    %755 = vmatprep.subr.bf16.mxu0 %v333
    %756 = vmatpush1.bf16.msra.mxu0 %v332
    %757 = vmatprep.subr.bf16.mxu0 %v341
    %758 = vmatpush1.bf16.msra.mxu0 %v340
    %759 = vmatprep.subr.bf16.mxu0 %v349
    %760 = vmatpush1.bf16.msra.mxu0 %v348
    %761 = vmatprep.subr.bf16.mxu0 %v357
    %762 = vmatpush1.bf16.msra.mxu0 %v356
    %763 = vmatprep.subr.bf16.mxu0 %v365
    %764 = vmatpush1.bf16.msra.mxu0 %v364
    %765 = vmatprep.subr.bf16.mxu0 %v373
    %766 = vmatpush1.bf16.msra.mxu0 %v372
    %767 = vmatprep.subr.bf16.mxu0 %v381
    %768 = vmatpush1.bf16.msra.mxu0 %v380
    %769 = vmatprep.subr.bf16.mxu0 %v389
    %770 = vmatpush1.bf16.msra.mxu0 %v388
    %771 = vmatprep.subr.bf16.mxu0 0
    %772 = vmatpush1.bf16.msra.mxu0 0
    %773 = vmatprep.subr.bf16.mxu0 0
    %774 = vmatpush1.bf16.msra.mxu0 0
    %775 = vmatprep.subr.bf16.mxu0 0
    %776 = vmatpush1.bf16.msra.mxu0 0
    %777 = vmatprep.subr.bf16.mxu0 0
    %778 = vmatpush1.bf16.msra.mxu0 0
    %779 = vmatprep.subr.bf16.mxu0 0
    %780 = vmatpush1.bf16.msra.mxu0 0
    %781 = vmatprep.subr.bf16.mxu0 0
    %782 = vmatpush1.bf16.msra.mxu0 0
    %783 = vmatprep.subr.bf16.mxu0 0
    %784 = vmatpush1.bf16.msra.mxu0 0
    %785 = vmatprep.subr.bf16.mxu0 0
    %786 = vmatpush1.bf16.msra.mxu0 0
    %787 = vmatprep.mubr.bf16.mxu0 0
    %788 = vmatmul.mubr.bf16.gmra.mrb[0].mxu0 %v59
    %v789 = vpop.f32.mrb[0].mxu0
    %v790 = vadd.f32 %v618, %v789
    %v791 = vpop.f32.mrb[0].mxu0
    %v792 = vadd.f32 %v620, %v791
    %v793 = vpop.f32.mrb[0].mxu0
    %v794 = vadd.f32 %v622, %v793
    %v795 = vpop.f32.mrb[0].mxu0
    %v796 = vadd.f32 %v624, %v795
    %797 = vdwg.mxu0
    %798 = vmatprep.subr.bf16.mxu0 %v327
    %799 = vmatpush1.bf16.msra.mxu0 %v326
    %800 = vmatprep.subr.bf16.mxu0 %v335
    %801 = vmatpush1.bf16.msra.mxu0 %v334
    %802 = vmatprep.subr.bf16.mxu0 %v343
    %803 = vmatpush1.bf16.msra.mxu0 %v342
    %804 = vmatprep.subr.bf16.mxu0 %v351
    %805 = vmatpush1.bf16.msra.mxu0 %v350
    %806 = vmatprep.subr.bf16.mxu0 %v359
    %807 = vmatpush1.bf16.msra.mxu0 %v358
    %808 = vmatprep.subr.bf16.mxu0 %v367
    %809 = vmatpush1.bf16.msra.mxu0 %v366
    %810 = vmatprep.subr.bf16.mxu0 %v375
    %811 = vmatpush1.bf16.msra.mxu0 %v374
    %812 = vmatprep.subr.bf16.mxu0 %v383
    %813 = vmatpush1.bf16.msra.mxu0 %v382
    %814 = vmatprep.subr.bf16.mxu0 0
    %815 = vmatpush1.bf16.msra.mxu0 0
    %816 = vmatprep.subr.bf16.mxu0 0
    %817 = vmatpush1.bf16.msra.mxu0 0
    %818 = vmatprep.subr.bf16.mxu0 0
    %819 = vmatpush1.bf16.msra.mxu0 0
    %820 = vmatprep.subr.bf16.mxu0 0
    %821 = vmatpush1.bf16.msra.mxu0 0
    %822 = vmatprep.subr.bf16.mxu0 0
    %823 = vmatpush1.bf16.msra.mxu0 0
    %824 = vmatprep.subr.bf16.mxu0 0
    %825 = vmatpush1.bf16.msra.mxu0 0
    %826 = vmatprep.subr.bf16.mxu0 0
    %827 = vmatpush1.bf16.msra.mxu0 0
    %828 = vmatprep.subr.bf16.mxu0 0
    %829 = vmatpush1.bf16.msra.mxu0 0
    %830 = vmatprep.mubr.bf16.mxu0 0
    %831 = vmatmul.mubr.bf16.gmra.mrb[0].mxu0 %v69
    %v832 = vpop.f32.mrb[0].mxu0
    %v833 = vadd.f32 0.0, %v832
    %v834 = vpop.f32.mrb[0].mxu0
    %v835 = vadd.f32 0.0, %v834
    %v836 = vpop.f32.mrb[0].mxu0
    %v837 = vadd.f32 0.0, %v836
    %v838 = vpop.f32.mrb[0].mxu0
    %v839 = vadd.f32 0.0, %v838
    %840 = vdwg.mxu0
    %841 = vmatprep.subr.bf16.mxu0 %v329
    %842 = vmatpush1.bf16.msra.mxu0 %v328
    %843 = vmatprep.subr.bf16.mxu0 %v337
    %844 = vmatpush1.bf16.msra.mxu0 %v336
    %845 = vmatprep.subr.bf16.mxu0 %v345
    %846 = vmatpush1.bf16.msra.mxu0 %v344
    %847 = vmatprep.subr.bf16.mxu0 %v353
    %848 = vmatpush1.bf16.msra.mxu0 %v352
    %849 = vmatprep.subr.bf16.mxu0 %v361
    %850 = vmatpush1.bf16.msra.mxu0 %v360
    %851 = vmatprep.subr.bf16.mxu0 %v369
    %852 = vmatpush1.bf16.msra.mxu0 %v368
    %853 = vmatprep.subr.bf16.mxu0 %v377
    %854 = vmatpush1.bf16.msra.mxu0 %v376
    %855 = vmatprep.subr.bf16.mxu0 %v385
    %856 = vmatpush1.bf16.msra.mxu0 %v384
    %857 = vmatprep.subr.bf16.mxu0 0
    %858 = vmatpush1.bf16.msra.mxu0 0
    %859 = vmatprep.subr.bf16.mxu0 0
    %860 = vmatpush1.bf16.msra.mxu0 0
    %861 = vmatprep.subr.bf16.mxu0 0
    %862 = vmatpush1.bf16.msra.mxu0 0
    %863 = vmatprep.subr.bf16.mxu0 0
    %864 = vmatpush1.bf16.msra.mxu0 0
    %865 = vmatprep.subr.bf16.mxu0 0
    %866 = vmatpush1.bf16.msra.mxu0 0
    %867 = vmatprep.subr.bf16.mxu0 0
    %868 = vmatpush1.bf16.msra.mxu0 0
    %869 = vmatprep.subr.bf16.mxu0 0
    %870 = vmatpush1.bf16.msra.mxu0 0
    %871 = vmatprep.subr.bf16.mxu0 0
    %872 = vmatpush1.bf16.msra.mxu0 0
    %873 = vmatprep.mubr.bf16.mxu0 0
    %874 = vmatmul.mubr.bf16.gmra.mrb[0].mxu0 %v69
    %v875 = vpop.f32.mrb[0].mxu0
    %v876 = vadd.f32 0.0, %v875
    %v877 = vpop.f32.mrb[0].mxu0
    %v878 = vadd.f32 0.0, %v877
    %v879 = vpop.f32.mrb[0].mxu0
    %v880 = vadd.f32 0.0, %v879
    %v881 = vpop.f32.mrb[0].mxu0
    %v882 = vadd.f32 0.0, %v881
    %883 = vdwg.mxu0
    %884 = vmatprep.subr.bf16.mxu0 %v331
    %885 = vmatpush1.bf16.msra.mxu0 %v330
    %886 = vmatprep.subr.bf16.mxu0 %v339
    %887 = vmatpush1.bf16.msra.mxu0 %v338
    %888 = vmatprep.subr.bf16.mxu0 %v347
    %889 = vmatpush1.bf16.msra.mxu0 %v346
    %890 = vmatprep.subr.bf16.mxu0 %v355
    %891 = vmatpush1.bf16.msra.mxu0 %v354
    %892 = vmatprep.subr.bf16.mxu0 %v363
    %893 = vmatpush1.bf16.msra.mxu0 %v362
    %894 = vmatprep.subr.bf16.mxu0 %v371
    %895 = vmatpush1.bf16.msra.mxu0 %v370
    %896 = vmatprep.subr.bf16.mxu0 %v379
    %897 = vmatpush1.bf16.msra.mxu0 %v378
    %898 = vmatprep.subr.bf16.mxu0 %v387
    %899 = vmatpush1.bf16.msra.mxu0 %v386
    %900 = vmatprep.subr.bf16.mxu0 0
    %901 = vmatpush1.bf16.msra.mxu0 0
    %902 = vmatprep.subr.bf16.mxu0 0
    %903 = vmatpush1.bf16.msra.mxu0 0
    %904 = vmatprep.subr.bf16.mxu0 0
    %905 = vmatpush1.bf16.msra.mxu0 0
    %906 = vmatprep.subr.bf16.mxu0 0
    %907 = vmatpush1.bf16.msra.mxu0 0
    %908 = vmatprep.subr.bf16.mxu0 0
    %909 = vmatpush1.bf16.msra.mxu0 0
    %910 = vmatprep.subr.bf16.mxu0 0
    %911 = vmatpush1.bf16.msra.mxu0 0
    %912 = vmatprep.subr.bf16.mxu0 0
    %913 = vmatpush1.bf16.msra.mxu0 0
    %914 = vmatprep.subr.bf16.mxu0 0
    %915 = vmatpush1.bf16.msra.mxu0 0
    %916 = vmatprep.mubr.bf16.mxu0 0
    %917 = vmatmul.mubr.bf16.gmra.mrb[0].mxu0 %v69
    %v918 = vpop.f32.mrb[0].mxu0
    %v919 = vadd.f32 0.0, %v918
    %v920 = vpop.f32.mrb[0].mxu0
    %v921 = vadd.f32 0.0, %v920
    %v922 = vpop.f32.mrb[0].mxu0
    %v923 = vadd.f32 0.0, %v922
    %v924 = vpop.f32.mrb[0].mxu0
    %v925 = vadd.f32 0.0, %v924
    %926 = vdwg.mxu0
    %927 = vmatprep.subr.bf16.mxu0 %v333
    %928 = vmatpush1.bf16.msra.mxu0 %v332
    %929 = vmatprep.subr.bf16.mxu0 %v341
    %930 = vmatpush1.bf16.msra.mxu0 %v340
    %931 = vmatprep.subr.bf16.mxu0 %v349
    %932 = vmatpush1.bf16.msra.mxu0 %v348
    %933 = vmatprep.subr.bf16.mxu0 %v357
    %934 = vmatpush1.bf16.msra.mxu0 %v356
    %935 = vmatprep.subr.bf16.mxu0 %v365
    %936 = vmatpush1.bf16.msra.mxu0 %v364
    %937 = vmatprep.subr.bf16.mxu0 %v373
    %938 = vmatpush1.bf16.msra.mxu0 %v372
    %939 = vmatprep.subr.bf16.mxu0 %v381
    %940 = vmatpush1.bf16.msra.mxu0 %v380
    %941 = vmatprep.subr.bf16.mxu0 %v389
    %942 = vmatpush1.bf16.msra.mxu0 %v388
    %943 = vmatprep.subr.bf16.mxu0 0
    %944 = vmatpush1.bf16.msra.mxu0 0
    %945 = vmatprep.subr.bf16.mxu0 0
    %946 = vmatpush1.bf16.msra.mxu0 0
    %947 = vmatprep.subr.bf16.mxu0 0
    %948 = vmatpush1.bf16.msra.mxu0 0
    %949 = vmatprep.subr.bf16.mxu0 0
    %950 = vmatpush1.bf16.msra.mxu0 0
    %951 = vmatprep.subr.bf16.mxu0 0
    %952 = vmatpush1.bf16.msra.mxu0 0
    %953 = vmatprep.subr.bf16.mxu0 0
    %954 = vmatpush1.bf16.msra.mxu0 0
    %955 = vmatprep.subr.bf16.mxu0 0
    %956 = vmatpush1.bf16.msra.mxu0 0
    %957 = vmatprep.subr.bf16.mxu0 0
    %958 = vmatpush1.bf16.msra.mxu0 0
    %959 = vmatprep.mubr.bf16.mxu0 0
    %960 = vmatmul.mubr.bf16.gmra.mrb[0].mxu0 %v69
    %v961 = vpop.f32.mrb[0].mxu0
    %v962 = vadd.f32 0.0, %v961
    %v963 = vpop.f32.mrb[0].mxu0
    %v964 = vadd.f32 0.0, %v963
    %v965 = vpop.f32.mrb[0].mxu0
    %v966 = vadd.f32 0.0, %v965
    %v967 = vpop.f32.mrb[0].mxu0
    %v968 = vadd.f32 0.0, %v967
    %969 = vdwg.mxu0
    %v970 = vadd.f32 %v661, %v833
    %v971 = vadd.f32 %v663, %v835
    %v972 = vadd.f32 %v704, %v876
    %v973 = vadd.f32 %v706, %v878
    %v974 = vadd.f32 %v747, %v919
    %v975 = vadd.f32 %v749, %v921
    %v976 = vadd.f32 %v790, %v962
    %v977 = vadd.f32 %v792, %v964
    %v978 = vadd.f32 %v665, %v837
    %v979 = vadd.f32 %v667, %v839
    %v980 = vadd.f32 %v708, %v880
    %v981 = vadd.f32 %v710, %v882
    %v982 = vadd.f32 %v751, %v923
    %v983 = vadd.f32 %v753, %v925
    %v984 = vadd.f32 %v794, %v966
    %v985 = vadd.f32 %v796, %v968
    %v986 = vld [vmem:[#allocation7] sm:$0xff]
    %v988 = vlaneseq
    %v989 = vshrl.u32 %v988, 7
    %v990 = vsub.s32 0, %v989
    %v991 = vrot.slane %v986, %v990
    %v992 = vlaneseq
    %v993 = vshrl.u32 %v992, 7
    %v994 = vsub.s32 1, %v993
    %v995 = vrot.slane %v986, %v994
    %v996 = vlaneseq
    %v997 = vshrl.u32 %v996, 7
    %v998 = vsub.s32 2, %v997
    %v999 = vrot.slane %v986, %v998
    %v1000 = vlaneseq
    %v1001 = vshrl.u32 %v1000, 7
    %v1002 = vsub.s32 3, %v1001
    %v1003 = vrot.slane %v986, %v1002
    %v1004 = vlaneseq
    %v1005 = vshrl.u32 %v1004, 7
    %v1006 = vsub.s32 4, %v1005
    %v1007 = vrot.slane %v986, %v1006
    %v1008 = vlaneseq
    %v1009 = vshrl.u32 %v1008, 7
    %v1010 = vsub.s32 5, %v1009
    %v1011 = vrot.slane %v986, %v1010
    %v1012 = vlaneseq
    %v1013 = vshrl.u32 %v1012, 7
    %v1014 = vsub.s32 6, %v1013
    %v1015 = vrot.slane %v986, %v1014
    %v1016 = vlaneseq
    %v1017 = vshrl.u32 %v1016, 7
    %v1018 = vsub.s32 7, %v1017
    %v1019 = vrot.slane %v986, %v1018
    %v1028 = vsub.f32 %v970, %v991
    %v1029 = vsub.f32 %v971, %v995
    %v1030 = vsub.f32 %v972, %v999
    %v1031 = vsub.f32 %v973, %v1003
    %v1032 = vsub.f32 %v974, %v1007
    %v1033 = vsub.f32 %v975, %v1011
    %v1034 = vsub.f32 %v976, %v1015
    %v1035 = vsub.f32 %v977, %v1019
    %v1036 = vsub.f32 %v978, %v991
    %v1037 = vsub.f32 %v979, %v995
    %v1038 = vsub.f32 %v980, %v999
    %v1039 = vsub.f32 %v981, %v1003
    %v1040 = vsub.f32 %v982, %v1007
    %v1041 = vsub.f32 %v983, %v1011
    %v1042 = vsub.f32 %v984, %v1015
    %v1043 = vsub.f32 %v985, %v1019
    %v1044 = vmul.f32 %v1028, %v1028
    %v1045 = vmul.f32 %v1029, %v1029
    %v1046 = vmul.f32 %v1030, %v1030
    %v1047 = vmul.f32 %v1031, %v1031
    %v1048 = vmul.f32 %v1032, %v1032
    %v1049 = vmul.f32 %v1033, %v1033
    %v1050 = vmul.f32 %v1034, %v1034
    %v1051 = vmul.f32 %v1035, %v1035
    %v1052 = vmul.f32 %v1036, %v1036
    %v1053 = vmul.f32 %v1037, %v1037
    %v1054 = vmul.f32 %v1038, %v1038
    %v1055 = vmul.f32 %v1039, %v1039
    %v1056 = vmul.f32 %v1040, %v1040
    %v1057 = vmul.f32 %v1041, %v1041
    %v1058 = vmul.f32 %v1042, %v1042
    %v1059 = vmul.f32 %v1043, %v1043
    %v1060 = vsub.f32 0.0, %v1044
    %v1061 = vsub.f32 0.0, %v1045
    %v1062 = vsub.f32 0.0, %v1046
    %v1063 = vsub.f32 0.0, %v1047
    %v1064 = vsub.f32 0.0, %v1048
    %v1065 = vsub.f32 0.0, %v1049
    %v1066 = vsub.f32 0.0, %v1050
    %v1067 = vsub.f32 0.0, %v1051
    %v1068 = vsub.f32 0.0, %v1052
    %v1069 = vsub.f32 0.0, %v1053
    %v1070 = vsub.f32 0.0, %v1054
    %v1071 = vsub.f32 0.0, %v1055
    %v1072 = vsub.f32 0.0, %v1056
    %v1073 = vsub.f32 0.0, %v1057
    %v1074 = vsub.f32 0.0, %v1058
    %v1075 = vsub.f32 0.0, %v1059
    %v1076 = vmul.f32 %v1060, 1.442695
    %v1077 = vpow.pop %v1076
    %v1078 = vmul.f32 %v1061, 1.442695
    %v1079 = vpow.pop %v1078
    %v1080 = vmul.f32 %v1062, 1.442695
    %v1081 = vpow.pop %v1080
    %v1082 = vmul.f32 %v1063, 1.442695
    %v1083 = vpow.pop %v1082
    %v1084 = vmul.f32 %v1064, 1.442695
    %v1085 = vpow.pop %v1084
    %v1086 = vmul.f32 %v1065, 1.442695
    %v1087 = vpow.pop %v1086
    %v1088 = vmul.f32 %v1066, 1.442695
    %v1089 = vpow.pop %v1088
    %v1090 = vmul.f32 %v1067, 1.442695
    %v1091 = vpow.pop %v1090
    %v1092 = vmul.f32 %v1068, 1.442695
    %v1093 = vpow.pop %v1092
    %v1094 = vmul.f32 %v1069, 1.442695
    %v1095 = vpow.pop %v1094
    %v1096 = vmul.f32 %v1070, 1.442695
    %v1097 = vpow.pop %v1096
    %v1098 = vmul.f32 %v1071, 1.442695
    %v1099 = vpow.pop %v1098
    %v1100 = vmul.f32 %v1072, 1.442695
    %v1101 = vpow.pop %v1100
    %v1102 = vmul.f32 %v1073, 1.442695
    %v1103 = vpow.pop %v1102
    %v1104 = vmul.f32 %v1074, 1.442695
    %v1105 = vpow.pop %v1104
    %v1106 = vmul.f32 %v1075, 1.442695
    %v1107 = vpow.pop %v1106
    %1108 = vst [vmem:[#allocation8] sm:$0xff] %v1077
    %1109 = vst [vmem:[#allocation8 + $0x8] sm:$0xff] %v1079
    %1110 = vst [vmem:[#allocation8 + $0x10] sm:$0xff] %v1081
    %1111 = vst [vmem:[#allocation8 + $0x18] sm:$0xff] %v1083
    %1112 = vst [vmem:[#allocation8 + $0x20] sm:$0xff] %v1085
    %1113 = vst [vmem:[#allocation8 + $0x28] sm:$0xff] %v1087
    %1114 = vst [vmem:[#allocation8 + $0x30] sm:$0xff] %v1089
    %1115 = vst [vmem:[#allocation8 + $0x38] sm:$0xff] %v1091
    %1116 = vst [vmem:[#allocation8 + $0x40] sm:$0xff] %v1093
    %1117 = vst [vmem:[#allocation8 + $0x48] sm:$0xff] %v1095
    %1118 = vst [vmem:[#allocation8 + $0x50] sm:$0xff] %v1097
    %1119 = vst [vmem:[#allocation8 + $0x58] sm:$0xff] %v1099
    %1120 = vst [vmem:[#allocation8 + $0x60] sm:$0xff] %v1101
    %1121 = vst [vmem:[#allocation8 + $0x68] sm:$0xff] %v1103
    %1122 = vst [vmem:[#allocation8 + $0x70] sm:$0xff] %v1105
    %1123 = vst [vmem:[#allocation8 + $0x78] sm:$0xff] %v1107
    // Predicated region
    $region26: #{tpu_custom_call.1} parent=1 // pred_check
      _
    $region27: #{tpu_custom_call.1} parent=1 // pred_check_branch
      %1125 = sbr.rel (0) target = $region29
    $region28: #{tpu_custom_call.1} parent=1 // pred_region
      %s1127 = ssub.s32 2048, 2048
      %1128 = vsyncadd [#allocation4], %s1127
      %s1129 = sshll.u32 [#allocation8], 4
      %s1130 = int_to_ptr.vmem [resolvable:$true] %s1129
      %1135 = dma.vmem_to_hbm [thread:$0]  %s1130, 2048, %s3, [#allocation4], 1024, 1024, 64
    $region29: #{tpu_custom_call.1} parent=1 // pred_fallthru
      _
    // Predicated region
    $region30: #{tpu_custom_call.1} parent=1 // pred_check
      _
    $region31: #{tpu_custom_call.1} parent=1 // pred_check_branch
      %1137 = sbr.rel (0) target = $region33
    $region32: #{tpu_custom_call.1} parent=1 // pred_region
      %1138 = dma.done [#allocation4], 2048
    $region33: #{tpu_custom_call.1} parent=1 // pred_fallthru
      _
    %1139 = vsyncpa [#allocation3], 1
    %1140 = vsyncpa [#allocation6], 1
    %1141 = vsyncpa [#allocation4], 1

</llo_original>
